<compile_context>
chip_gen: v7x
topology: tpu7x:2x2x1
jax: 0.10.0
libtpu: 0.0.40
codegen_flags: <defaults>
</compile_context>

<pallas_src>
import jax
import jax.numpy as jnp
from jax.experimental import pallas as pl
from jax.experimental.pallas import tpu as pltpu


def fast_attention_kernel(h_ref, addm_ref, expand_ref,
                          wfused_ref, bfused_ref,
                          wkl_ref, bkl_ref,
                          wt_ref, bt_ref,
                          out_ref):
    bb, T, Hp = h_ref.shape
    NHP = expand_ref.shape[0]
    cdt = h_ref.dtype                       # MXU input dtype (bf16)
    f32 = jnp.float32

    h2 = h_ref[...].reshape(bb * T, Hp)     # [bb*T, Hp] (leading-dim reshape: free)
    addm = addm_ref[...]                    # [bb, T, 1] additive mask, f32
    expand_c = expand_ref[...]              # [NHP, Hp] head-selection (exact 0/1, bf16)

    # ---- fused query / key / q-logits projection (single MXU pass over h) ----------
    proj = jnp.dot(h2, wfused_ref[...], preferred_element_type=f32) + bfused_ref[...]
    mq2 = proj[:, :Hp]                                 # [bb*T, Hp] f32 (kept for residual)
    mq3 = mq2.reshape(bb, T, Hp)
    mk3 = proj[:, Hp:2 * Hp].reshape(bb, T, Hp)
    q_logits3 = proj[:, 2 * Hp:].reshape(bb, T, NHP)   # 1/sqrt(head_size) already folded

    def softmax_tokens(logits3):
        # masked softmax over the token axis, batched over all bb batch elements.
        lg = logits3 + addm
        lg = lg - jnp.max(lg, axis=1, keepdims=True)
        e = jnp.exp(lg)
        inv = 1.0 / jnp.sum(e, axis=1, keepdims=True)
        return e * inv                                  # [bb, T, NHP]

    def pool(attn3, m3):
        # pooled[b, c] = sum_t attn[b, t, c // head_size] * m[b, t, c]
        if T <= NHP:
            # broadcast per-head weights to the hidden axis via one flattened MXU
            # matmul, then a T-row sublane reduce (no transposes, no NHP-row reduce).
            g = jnp.dot(attn3.reshape(bb * T, NHP).astype(cdt), expand_c,
                        preferred_element_type=f32).reshape(bb, T, Hp)
            return jnp.sum(g * m3, axis=1, keepdims=True)           # [bb, 1, Hp]
        # long sequences: contract over T per batch, then select heads.
        ph = jax.lax.dot_general(attn3.astype(cdt), m3.astype(cdt),
                                 dimension_numbers=(((1,), (1,)), ((0,), (0,))),
                                 preferred_element_type=f32)        # [bb, NHP, Hp]
        return jnp.sum(ph * expand_c[None], axis=1, keepdims=True)  # [bb, 1, Hp]

    # ---- global query ----------------------------------------------------------------
    alpha = softmax_tokens(q_logits3)
    pooled_q = pool(alpha, mq3)                         # [bb, 1, Hp]

    # ---- key path: query*key interaction, logits, global key --------------------------
    mqk3 = mk3 * pooled_q                               # [bb, T, Hp]
    k_logits3 = (jnp.dot(mqk3.reshape(bb * T, Hp).astype(cdt), wkl_ref[...],
                         preferred_element_type=f32)
                 + bkl_ref[...]).reshape(bb, T, NHP)    # scale folded into wkl/bkl
    beta = softmax_tokens(k_logits3)
    pooled_k = pool(beta, mqk3)                         # [bb, 1, Hp]

    # ---- value interaction + output transform + residual -------------------------------
    wv2 = (mq3 * pooled_k).reshape(bb * T, Hp)
    out2 = (jnp.dot(wv2.astype(cdt), wt_ref[...], preferred_element_type=f32)
            + bt_ref[...] + mq2)
    # TODO(synk): nn.Dropout(p=0.1) is identity in eval mode; training-mode dropout not implemented.
    out_ref[...] = out2.reshape(bb, T, Hp).astype(out_ref.dtype)


def _vmem_capacity_bytes():
    """Physical VMEM of the attached TPU; conservative 64 MiB if unknown."""
    try:
        info = pltpu.get_tpu_info()
        cap = getattr(info, "vmem_capacity_bytes", None)
        if cap:
            return int(cap)
    except Exception:
        pass
    return 64 * 1024 * 1024


def _pick_block_batch(B, T, bb_cap):
    """Largest divisor of B that fits the VMEM budget, preferring an even grid-step
    count (2-TensorCore chips) and an MXU-aligned M = bb*T (multiple of 256/128)."""
    best, best_key = 1, None
    for bb in range(1, B + 1):
        if B % bb or bb > bb_cap:
            continue
        steps = B // bb
        m = bb * T
        align = 2 if m % 256 == 0 else (1 if m % 128 == 0 else 0)
        even = 1 if steps % 2 == 0 else 0
        key = (even, align, bb)
        if best_key is None or key > best_key:
            best, best_key = bb, key
    return best


def fast_attention(hidden, mask, params, *, num_heads, head_size,
                   block_batch=None, compute_dtype=jnp.bfloat16):
    B, T, H = hidden.shape
    if H != num_heads * head_size:
        raise ValueError("hidden size must equal num_heads * head_size")
    (wq, bq, wk, bk, wql, bql, wkl, bkl, wt, bt) = params
    f32 = jnp.float32
    scale = 1.0 / (head_size ** 0.5)

    # Lane-dense padded widths (multiples of 128) for the hidden and head axes.
    Hp = pl.cdiv(H, 128) * 128
    NHP = pl.cdiv(num_heads, 128) * 128
    fused_cols = 2 * Hp + NHP

    def padw(w, rows, cols):
        return jnp.zeros((rows, cols), f32).at[:w.shape[0], :w.shape[1]].set(w.astype(f32))

    def padb(b, cols):
        return jnp.zeros((1, cols), f32).at[:, :b.shape[1]].set(b.astype(f32))

    # Fused hidden-side weight [wq | wk | (wq @ wql) * scale]: q-logits folded through
    # the query projection, 1/sqrt(head_size) folded into weights and biases.
    wql_fold = scale * (wq.astype(f32) @ wql.astype(f32))                     # [H, heads]
    bql_fold = scale * (bq.astype(f32) @ wql.astype(f32) + bql.astype(f32))   # [1, heads]
    wfused = jnp.concatenate(
        [padw(wq, Hp, Hp), padw(wk, Hp, Hp), padw(wql_fold, Hp, NHP)],
        axis=1).astype(compute_dtype)                                         # [Hp, 2Hp+NHP]
    bfused = jnp.concatenate([padb(bq, Hp), padb(bk, Hp), padb(bql_fold, NHP)],
                             axis=1)                                          # [1, 2Hp+NHP] f32

    wkl_p = (scale * padw(wkl, Hp, NHP)).astype(compute_dtype)
    bkl_p = scale * padb(bkl, NHP)
    wt_c = padw(wt, Hp, Hp).astype(compute_dtype)
    bt_p = padb(bt, Hp)

    # head -> hidden selection matrix (exact 0/1, bf16), zero on padded columns.
    col = jnp.arange(Hp, dtype=jnp.int32)
    row = jnp.arange(NHP, dtype=jnp.int32)
    expand = ((row[:, None] == (col // head_size)[None, :]) & (col < H)[None, :]
              ).astype(compute_dtype)                                         # [NHP, Hp]

    h_c = hidden.astype(compute_dtype)
    if Hp != H:
        h_c = jnp.pad(h_c, ((0, 0), (0, 0), (0, Hp - H)))
    addm = ((1.0 - mask.astype(f32)) * -10000.0).reshape(B, T, 1)

    cd_size = jnp.dtype(compute_dtype).itemsize

    # ---- generation-aware VMEM budget and block_batch -----------------------------------
    weight_bytes = ((Hp * fused_cols + Hp * NHP + Hp * Hp + NHP * Hp) * cd_size
                    + (fused_cols + NHP + Hp) * 4)
    weight_vmem = 2 * weight_bytes                     # default pipelining double-buffers
    per_b_bytes = T * (2 * 2 * Hp * cd_size                      # double-buffered in/out tiles
                       + 4 * (fused_cols + 4 * Hp + 2 * NHP)     # live f32 temporaries
                       + 2 * (fused_cols + 2 * Hp)               # transient bf16 casts
                       ) + 8 * T                                 # mask tile
    vmem_ceiling = min(100 * 1024 * 1024, int(_vmem_capacity_bytes() * 0.8))
    usable = vmem_ceiling - weight_vmem - (2 << 20)
    bb_cap = max(1, usable // max(1, per_b_bytes))

    if block_batch is None:
        bb = _pick_block_batch(B, T, bb_cap)
    else:
        bb = int(block_batch)
        if bb < 1 or B % bb:
            raise ValueError("block_batch must divide the batch size")
    grid = (B // bb,)

    vmem_est = weight_vmem + bb * per_b_bytes + (4 << 20)
    vmem_limit = int(min(max(vmem_est, 32 * 1024 * 1024), vmem_ceiling))

    # ---- advisory cost estimate ----------------------------------------------------------
    flops = (2 * B * T * Hp * fused_cols        # fused projection
             + 2 * B * T * Hp * NHP             # k-logits
             + 2 * B * T * Hp * Hp              # output transform
             + 2 * 2 * B * T * NHP * Hp)        # the two head poolings
    transcendentals = 2 * B * T * NHP
    bytes_accessed = 2 * B * T * Hp * cd_size + B * T * 4 + weight_bytes

    weights = (wfused, bfused, wkl_p, bkl_p, wt_c, bt_p)

    grid_spec = pltpu.PrefetchScalarGridSpec(
        num_scalar_prefetch=0,
        grid=grid,
        in_specs=[
            pl.BlockSpec((bb, T, Hp), lambda i: (i, 0, 0)),        # hidden (padded)
            pl.BlockSpec((bb, T, 1), lambda i: (i, 0, 0)),         # additive mask
            pl.BlockSpec(expand.shape, lambda i: (0, 0)),          # head selection
            *[pl.BlockSpec(w.shape, lambda i: (0, 0)) for w in weights],
        ],
        out_specs=pl.BlockSpec((bb, T, Hp), lambda i: (i, 0, 0)),
    )

    fn = pl.pallas_call(
        fast_attention_kernel,
        out_shape=jax.ShapeDtypeStruct((B, T, Hp), compute_dtype),
        grid_spec=grid_spec,
        compiler_params=pltpu.CompilerParams(
            dimension_semantics=("parallel",),
            vmem_limit_bytes=vmem_limit),
        cost_estimate=pl.CostEstimate(flops=flops,
                                      transcendentals=transcendentals,
                                      bytes_accessed=bytes_accessed),
    )
    out = fn(h_c, addm, expand, *weights)
    if Hp != H:
        out = out[:, :, :H]
    return out.astype(hidden.dtype)


def init_params(key, dim, num_heads, initializer_range=0.02):
    """Deterministic init matching the module: weight ~ N(0, 0.02), bias = 0.
    Weights stored [in, out] (y = x @ W + b)."""
    ks = jax.random.split(key, 5)

    def lin(k, fan_in, fan_out):
        w = initializer_range * jax.random.normal(k, (fan_in, fan_out), jnp.float32)
        b = jnp.zeros((1, fan_out), jnp.float32)
        return w, b

    wq, bq = lin(ks[0], dim, dim)          # query
    wql, bql = lin(ks[1], dim, num_heads)  # to_q_attn_logits
    wk, bk = lin(ks[2], dim, dim)          # key
    wkl, bkl = lin(ks[3], dim, num_heads)  # to_k_attn_logits
    wt, bt = lin(ks[4], dim, dim)          # transform
    return (wq, bq, wk, bk, wql, bql, wkl, bkl, wt, bt)


def fast_attention_ref(hidden, mask, params, *, num_heads, head_size):
    """Pure-JAX f32 reference mirroring the PyTorch forward (eval mode)."""
    (wq, bq, wk, bk, wql, bql, wkl, bkl, wt, bt) = params
    B, T, H = hidden.shape
    addm = (1.0 - mask.astype(hidden.dtype))[:, :, None] * -10000.0   # [B, T, 1]
    scale = 1.0 / (head_size ** 0.5)

    mq = hidden @ wq + bq
    mk = hidden @ wk + bk

    q_logits = (mq @ wql + bql) * scale + addm                        # [B, T, heads]
    alpha = jax.nn.softmax(q_logits, axis=1)
    mq_h = mq.reshape(B, T, num_heads, head_size)
    pooled_q = jnp.einsum('bth,bthd->bhd', alpha, mq_h).reshape(B, 1, H)

    mqk = mk * pooled_q
    k_logits = (mqk @ wkl + bkl) * scale + addm
    beta = jax.nn.softmax(k_logits, axis=1)
    mqk_h = mqk.reshape(B, T, num_heads, head_size)
    pooled_k = jnp.einsum('bth,bthd->bhd', beta, mqk_h).reshape(B, 1, H)

    wv = mq * pooled_k
    return wv @ wt + bt + mq


if __name__ == "__main__":
    B, T = 4, 8
    dim, num_heads = 32, 4
    head_size = dim // num_heads

    key = jax.random.PRNGKey(0)
    k_h, k_p = jax.random.split(key)
    hidden = jax.random.normal(k_h, (B, T, dim), jnp.float32)
    # attention mask: batches 1 and 3 have trailing padded tokens
    mask = jnp.ones((B, T), jnp.float32)
    mask = mask.at[1, -2:].set(0.0).at[3, -3:].set(0.0)

    params = init_params(k_p, dim, num_heads)

    out = fast_attention(hidden, mask, params,
                         num_heads=num_heads, head_size=head_size)
    out = jax.block_until_ready(out)

    ref = fast_attention_ref(hidden, mask, params,
                             num_heads=num_heads, head_size=head_size)
    assert out.shape == (B, T, dim)
    max_err = jnp.max(jnp.abs(out.astype(jnp.float32) - ref))
    assert max_err < 2e-2, f"Pallas output mismatch vs reference (max abs err {max_err})"

    print("KERNEL_OK")
</pallas_src>

<mosaic_0001>
module attributes {stable_mosaic.version = 11 : i64} {
  func.func @fast_attention_kernel(%arg0: i32, %arg1: memref<2x8x128xbf16, #tpu.memory_space<vmem>>, %arg2: memref<2x8x1xf32, #tpu.memory_space<vmem>>, %arg3: memref<128x128xbf16, #tpu.memory_space<vmem>>, %arg4: memref<128x384xbf16, #tpu.memory_space<vmem>>, %arg5: memref<1x384xf32, #tpu.memory_space<vmem>>, %arg6: memref<128x128xbf16, #tpu.memory_space<vmem>>, %arg7: memref<1x128xf32, #tpu.memory_space<vmem>>, %arg8: memref<128x128xbf16, #tpu.memory_space<vmem>>, %arg9: memref<1x128xf32, #tpu.memory_space<vmem>>, %arg10: memref<2x8x128xbf16, #tpu.memory_space<vmem>>) attributes {dimension_semantics = [#tpu.dimension_semantics<parallel>], iteration_bounds = array<i64: 2>, scalar_prefetch = 0 : i64, scratch_operands = 0 : i64, tpu.core_type = #tpu.core_type<tc>, window_params = [{transform_indices = @transform_0, window_bounds = array<i64: 2, 8, 128>}, {transform_indices = @transform_1, window_bounds = array<i64: 2, 8, 1>}, {pipeline_mode = #tpu.pipeline_mode<synchronous>, transform_indices = @transform_2, window_bounds = array<i64: 128, 128>}, {pipeline_mode = #tpu.pipeline_mode<synchronous>, transform_indices = @transform_3, window_bounds = array<i64: 128, 384>}, {pipeline_mode = #tpu.pipeline_mode<synchronous>, transform_indices = @transform_4, window_bounds = array<i64: 1, 384>}, {pipeline_mode = #tpu.pipeline_mode<synchronous>, transform_indices = @transform_5, window_bounds = array<i64: 128, 128>}, {pipeline_mode = #tpu.pipeline_mode<synchronous>, transform_indices = @transform_6, window_bounds = array<i64: 1, 128>}, {pipeline_mode = #tpu.pipeline_mode<synchronous>, transform_indices = @transform_7, window_bounds = array<i64: 128, 128>}, {pipeline_mode = #tpu.pipeline_mode<synchronous>, transform_indices = @transform_8, window_bounds = array<i64: 1, 128>}, {transform_indices = @transform_9, window_bounds = array<i64: 2, 8, 128>}]} {
    %c0 = arith.constant 0 : index
    %c0_0 = arith.constant 0 : index
    %c0_1 = arith.constant 0 : index
    %0 = vector.load %arg1[%c0, %c0_0, %c0_1] : memref<2x8x128xbf16, #tpu.memory_space<vmem>>, vector<2x8x128xbf16>
    %1 = vector.shape_cast %0 : vector<2x8x128xbf16> to vector<16x128xbf16>
    %c0_2 = arith.constant 0 : index
    %c0_3 = arith.constant 0 : index
    %c0_4 = arith.constant 0 : index
    %2 = vector.load %arg2[%c0_2, %c0_3, %c0_4] : memref<2x8x1xf32, #tpu.memory_space<vmem>>, vector<2x8x1xf32>
    %c0_5 = arith.constant 0 : index
    %c0_6 = arith.constant 0 : index
    %3 = vector.load %arg3[%c0_5, %c0_6] : memref<128x128xbf16, #tpu.memory_space<vmem>>, vector<128x128xbf16>
    %c0_7 = arith.constant 0 : index
    %c0_8 = arith.constant 0 : index
    %4 = vector.load %arg4[%c0_7, %c0_8] : memref<128x384xbf16, #tpu.memory_space<vmem>>, vector<128x384xbf16>
    %cst = arith.constant dense<0.000000e+00> : vector<16x384xf32>
    %5 = tpu.matmul %1, %4, %cst {dimension_numbers = #tpu.dot_dimension_numbers<[1], [0], [0], [1], [0, 0, 1, 1], [], []>} : vector<16x128xbf16>, vector<128x384xbf16>, vector<16x384xf32> -> vector<16x384xf32>
    %c0_9 = arith.constant 0 : index
    %c0_10 = arith.constant 0 : index
    %6 = vector.load %arg5[%c0_9, %c0_10] : memref<1x384xf32, #tpu.memory_space<vmem>>, vector<1x384xf32>
    %7 = vector.broadcast %6 : vector<1x384xf32> to vector<16x384xf32>
    %8 = arith.addf %5, %7 : vector<16x384xf32>
    %9 = vector.extract_strided_slice %8 {offsets = [0, 0], sizes = [16, 128], strides = [1, 1]} : vector<16x384xf32> to vector<16x128xf32>
    %10 = vector.shape_cast %9 : vector<16x128xf32> to vector<2x8x128xf32>
    %11 = vector.extract_strided_slice %8 {offsets = [0, 128], sizes = [16, 128], strides = [1, 1]} : vector<16x384xf32> to vector<16x128xf32>
    %12 = vector.shape_cast %11 : vector<16x128xf32> to vector<2x8x128xf32>
    %13 = vector.extract_strided_slice %8 {offsets = [0, 256], sizes = [16, 128], strides = [1, 1]} : vector<16x384xf32> to vector<16x128xf32>
    %14 = vector.shape_cast %13 : vector<16x128xf32> to vector<2x8x128xf32>
    %15 = vector.broadcast %2 : vector<2x8x1xf32> to vector<2x8x128xf32>
    %16 = arith.addf %14, %15 : vector<2x8x128xf32>
    %cst_11 = arith.constant dense<0xFF800000> : vector<2x128xf32>
    %17 = vector.multi_reduction <maximumf>, %16, %cst_11 [1] : vector<2x8x128xf32> to vector<2x128xf32>
    %18 = vector.shape_cast %17 : vector<2x128xf32> to vector<2x1x128xf32>
    %19 = vector.broadcast %18 : vector<2x1x128xf32> to vector<2x8x128xf32>
    %20 = arith.subf %16, %19 : vector<2x8x128xf32>
    %21 = math.exp %20 : vector<2x8x128xf32>
    %cst_12 = arith.constant dense<0.000000e+00> : vector<2x128xf32>
    %22 = vector.multi_reduction <add>, %21, %cst_12 [1] : vector<2x8x128xf32> to vector<2x128xf32>
    %23 = vector.shape_cast %22 : vector<2x128xf32> to vector<2x1x128xf32>
    %cst_13 = arith.constant 1.000000e+00 : f32
    %24 = vector.broadcast %cst_13 : f32 to vector<2x1x128xf32>
    %25 = arith.divf %24, %23 : vector<2x1x128xf32>
    %26 = vector.broadcast %25 : vector<2x1x128xf32> to vector<2x8x128xf32>
    %27 = arith.mulf %21, %26 : vector<2x8x128xf32>
    %28 = vector.shape_cast %27 : vector<2x8x128xf32> to vector<16x128xf32>
    %29 = arith.truncf %28 : vector<16x128xf32> to vector<16x128xbf16>
    %cst_14 = arith.constant dense<0.000000e+00> : vector<16x128xf32>
    %30 = tpu.matmul %29, %3, %cst_14 {dimension_numbers = #tpu.dot_dimension_numbers<[1], [0], [0], [1], [0, 0, 1, 1], [], []>} : vector<16x128xbf16>, vector<128x128xbf16>, vector<16x128xf32> -> vector<16x128xf32>
    %31 = vector.shape_cast %30 : vector<16x128xf32> to vector<2x8x128xf32>
    %32 = arith.mulf %31, %10 : vector<2x8x128xf32>
    %cst_15 = arith.constant dense<0.000000e+00> : vector<2x128xf32>
    %33 = vector.multi_reduction <add>, %32, %cst_15 [1] : vector<2x8x128xf32> to vector<2x128xf32>
    %34 = vector.shape_cast %33 : vector<2x128xf32> to vector<2x1x128xf32>
    %35 = vector.broadcast %34 : vector<2x1x128xf32> to vector<2x8x128xf32>
    %36 = arith.mulf %12, %35 : vector<2x8x128xf32>
    %37 = vector.shape_cast %36 : vector<2x8x128xf32> to vector<16x128xf32>
    %38 = arith.truncf %37 : vector<16x128xf32> to vector<16x128xbf16>
    %c0_16 = arith.constant 0 : index
    %c0_17 = arith.constant 0 : index
    %39 = vector.load %arg6[%c0_16, %c0_17] : memref<128x128xbf16, #tpu.memory_space<vmem>>, vector<128x128xbf16>
    %cst_18 = arith.constant dense<0.000000e+00> : vector<16x128xf32>
    %40 = tpu.matmul %38, %39, %cst_18 {dimension_numbers = #tpu.dot_dimension_numbers<[1], [0], [0], [1], [0, 0, 1, 1], [], []>} : vector<16x128xbf16>, vector<128x128xbf16>, vector<16x128xf32> -> vector<16x128xf32>
    %c0_19 = arith.constant 0 : index
    %c0_20 = arith.constant 0 : index
    %41 = vector.load %arg7[%c0_19, %c0_20] : memref<1x128xf32, #tpu.memory_space<vmem>>, vector<1x128xf32>
    %42 = vector.broadcast %41 : vector<1x128xf32> to vector<16x128xf32>
    %43 = arith.addf %40, %42 : vector<16x128xf32>
    %44 = vector.shape_cast %43 : vector<16x128xf32> to vector<2x8x128xf32>
    %45 = vector.broadcast %2 : vector<2x8x1xf32> to vector<2x8x128xf32>
    %46 = arith.addf %44, %45 : vector<2x8x128xf32>
    %cst_21 = arith.constant dense<0xFF800000> : vector<2x128xf32>
    %47 = vector.multi_reduction <maximumf>, %46, %cst_21 [1] : vector<2x8x128xf32> to vector<2x128xf32>
    %48 = vector.shape_cast %47 : vector<2x128xf32> to vector<2x1x128xf32>
    %49 = vector.broadcast %48 : vector<2x1x128xf32> to vector<2x8x128xf32>
    %50 = arith.subf %46, %49 : vector<2x8x128xf32>
    %51 = math.exp %50 : vector<2x8x128xf32>
    %cst_22 = arith.constant dense<0.000000e+00> : vector<2x128xf32>
    %52 = vector.multi_reduction <add>, %51, %cst_22 [1] : vector<2x8x128xf32> to vector<2x128xf32>
    %53 = vector.shape_cast %52 : vector<2x128xf32> to vector<2x1x128xf32>
    %cst_23 = arith.constant 1.000000e+00 : f32
    %54 = vector.broadcast %cst_23 : f32 to vector<2x1x128xf32>
    %55 = arith.divf %54, %53 : vector<2x1x128xf32>
    %56 = vector.broadcast %55 : vector<2x1x128xf32> to vector<2x8x128xf32>
    %57 = arith.mulf %51, %56 : vector<2x8x128xf32>
    %58 = vector.shape_cast %57 : vector<2x8x128xf32> to vector<16x128xf32>
    %59 = arith.truncf %58 : vector<16x128xf32> to vector<16x128xbf16>
    %cst_24 = arith.constant dense<0.000000e+00> : vector<16x128xf32>
    %60 = tpu.matmul %59, %3, %cst_24 {dimension_numbers = #tpu.dot_dimension_numbers<[1], [0], [0], [1], [0, 0, 1, 1], [], []>} : vector<16x128xbf16>, vector<128x128xbf16>, vector<16x128xf32> -> vector<16x128xf32>
    %61 = vector.shape_cast %60 : vector<16x128xf32> to vector<2x8x128xf32>
    %62 = arith.mulf %61, %36 : vector<2x8x128xf32>
    %cst_25 = arith.constant dense<0.000000e+00> : vector<2x128xf32>
    %63 = vector.multi_reduction <add>, %62, %cst_25 [1] : vector<2x8x128xf32> to vector<2x128xf32>
    %64 = vector.shape_cast %63 : vector<2x128xf32> to vector<2x1x128xf32>
    %65 = vector.broadcast %64 : vector<2x1x128xf32> to vector<2x8x128xf32>
    %66 = arith.mulf %10, %65 : vector<2x8x128xf32>
    %67 = vector.shape_cast %66 : vector<2x8x128xf32> to vector<16x128xf32>
    %68 = arith.truncf %67 : vector<16x128xf32> to vector<16x128xbf16>
    %c0_26 = arith.constant 0 : index
    %c0_27 = arith.constant 0 : index
    %69 = vector.load %arg8[%c0_26, %c0_27] : memref<128x128xbf16, #tpu.memory_space<vmem>>, vector<128x128xbf16>
    %cst_28 = arith.constant dense<0.000000e+00> : vector<16x128xf32>
    %70 = tpu.matmul %68, %69, %cst_28 {dimension_numbers = #tpu.dot_dimension_numbers<[1], [0], [0], [1], [0, 0, 1, 1], [], []>} : vector<16x128xbf16>, vector<128x128xbf16>, vector<16x128xf32> -> vector<16x128xf32>
    %c0_29 = arith.constant 0 : index
    %c0_30 = arith.constant 0 : index
    %71 = vector.load %arg9[%c0_29, %c0_30] : memref<1x128xf32, #tpu.memory_space<vmem>>, vector<1x128xf32>
    %72 = vector.broadcast %71 : vector<1x128xf32> to vector<16x128xf32>
    %73 = arith.addf %70, %72 : vector<16x128xf32>
    %74 = arith.addf %73, %9 : vector<16x128xf32>
    %75 = vector.shape_cast %74 : vector<16x128xf32> to vector<2x8x128xf32>
    %76 = arith.truncf %75 : vector<2x8x128xf32> to vector<2x8x128xbf16>
    %c0_31 = arith.constant 0 : index
    %c0_32 = arith.constant 0 : index
    %c0_33 = arith.constant 0 : index
    %77 = vector.load %arg10[%c0_31, %c0_32, %c0_33] : memref<2x8x128xbf16, #tpu.memory_space<vmem>>, vector<2x8x128xbf16>
    tpu.vector_store %arg10[%c0_31, %c0_32, %c0_33], %76 {strides = array<i32>} : memref<2x8x128xbf16, #tpu.memory_space<vmem>>, vector<2x8x128xbf16>,
    return
  }
  func.func @transform_0(%arg0: i32) -> (i32, i32, i32) {
    %c0_i32 = arith.constant 0 : i32
    %c0_i32_0 = arith.constant 0 : i32
    %c0_i32_1 = arith.constant 0 : i32
    return %arg0, %c0_i32, %c0_i32_0 : i32, i32, i32
  }
  func.func @transform_1(%arg0: i32) -> (i32, i32, i32) {
    %c0_i32 = arith.constant 0 : i32
    %c0_i32_0 = arith.constant 0 : i32
    %c0_i32_1 = arith.constant 0 : i32
    return %arg0, %c0_i32, %c0_i32_0 : i32, i32, i32
  }
  func.func @transform_2(%arg0: i32) -> (i32, i32) {
    %c0_i32 = arith.constant 0 : i32
    %c0_i32_0 = arith.constant 0 : i32
    %c0_i32_1 = arith.constant 0 : i32
    return %c0_i32, %c0_i32_0 : i32, i32
  }
  func.func @transform_3(%arg0: i32) -> (i32, i32) {
    %c0_i32 = arith.constant 0 : i32
    %c0_i32_0 = arith.constant 0 : i32
    %c0_i32_1 = arith.constant 0 : i32
    return %c0_i32, %c0_i32_0 : i32, i32
  }
  func.func @transform_4(%arg0: i32) -> (i32, i32) {
    %c0_i32 = arith.constant 0 : i32
    %c0_i32_0 = arith.constant 0 : i32
    %c0_i32_1 = arith.constant 0 : i32
    return %c0_i32, %c0_i32_0 : i32, i32
  }
  func.func @transform_5(%arg0: i32) -> (i32, i32) {
    %c0_i32 = arith.constant 0 : i32
    %c0_i32_0 = arith.constant 0 : i32
    %c0_i32_1 = arith.constant 0 : i32
    return %c0_i32, %c0_i32_0 : i32, i32
  }
  func.func @transform_6(%arg0: i32) -> (i32, i32) {
    %c0_i32 = arith.constant 0 : i32
    %c0_i32_0 = arith.constant 0 : i32
    %c0_i32_1 = arith.constant 0 : i32
    return %c0_i32, %c0_i32_0 : i32, i32
  }
  func.func @transform_7(%arg0: i32) -> (i32, i32) {
    %c0_i32 = arith.constant 0 : i32
    %c0_i32_0 = arith.constant 0 : i32
    %c0_i32_1 = arith.constant 0 : i32
    return %c0_i32, %c0_i32_0 : i32, i32
  }
  func.func @transform_8(%arg0: i32) -> (i32, i32) {
    %c0_i32 = arith.constant 0 : i32
    %c0_i32_0 = arith.constant 0 : i32
    %c0_i32_1 = arith.constant 0 : i32
    return %c0_i32, %c0_i32_0 : i32, i32
  }
  func.func @transform_9(%arg0: i32) -> (i32, i32, i32) {
    %c0_i32 = arith.constant 0 : i32
    %c0_i32_0 = arith.constant 0 : i32
    %c0_i32_1 = arith.constant 0 : i32
    return %arg0, %c0_i32, %c0_i32_0 : i32, i32, i32
  }
}

</mosaic_0001>

<llo_original>
// kernel: tpu_custom_call.1
$region0: #{tpu_custom_call.1}
  #allocation0 [shape = 'u32[]', space=smem, size = 0x4, offset = 0x4, fixed_abs, tag = 'smem constant byte address 0x4 - core index']
  #allocation1 [shape = 'u32[144,128]{1,0:T(1,128)}', space=vmem, size = 0x12000, scoped, tag = 'internal scratch']
  %s0 = inlined_call_operand.vmem [shape: bf16[4,8,128], index: 0, kind: input, shape index: {}]
  %s1 = inlined_call_operand.vmem [shape: f32[4,8,1], index: 1, kind: input, shape index: {}]
  %s2 = inlined_call_operand.hbm [shape: bf16[128,128], index: 2, kind: input, shape index: {}]
  %s3 = inlined_call_operand.hbm [shape: bf16[128,384], index: 3, kind: input, shape index: {}]
  %s4 = inlined_call_operand.vmem [shape: f32[1,384], index: 4, kind: input, shape index: {}]
  %s5 = inlined_call_operand.hbm [shape: bf16[128,128], index: 5, kind: input, shape index: {}]
  %s6 = inlined_call_operand.vmem [shape: f32[1,128], index: 6, kind: input, shape index: {}]
  %s7 = inlined_call_operand.hbm [shape: bf16[128,128], index: 7, kind: input, shape index: {}]
  %s8 = inlined_call_operand.vmem [shape: f32[1,128], index: 8, kind: input, shape index: {}]
  %s9 = inlined_call_operand.hbm [shape: bf16[4,8,128], index: 9, kind: output, shape index: {}]
  %s10 = sld [smem:[#allocation0]]
  $region85: #{tpu_custom_call.1} parent=0
    _
  %s12 = ssub.s32 1, %s10
  %s13 = scalar_select 0, %s12, %s10
  $region1: #{tpu_custom_call.1} parent=0
    #allocation2 [shape = 'u8[32768]{0}', space=vmem, size = 0x8000, scoped, tag = 'input window, operand 2, single buffered']
    #allocation3 [shape = 's32[2]{0}', space=sflag, size = 0x8, scoped, tag = 'scoped memory for tpu_custom_call.1']
    #allocation4 [shape = 's32[2]{0}', space=sflag, size = 0x8, scoped, tag = 'scoped memory for tpu_custom_call.1']
    #allocation5 [shape = 'u8[98304]{0}', space=vmem, size = 0x18000, scoped, tag = 'input window, operand 3, single buffered']
    #allocation6 [shape = 's32[1]{0}', space=sflag, size = 0x4, scoped, tag = 'scoped memory for tpu_custom_call.1']
    #allocation7 [shape = 'u8[32768]{0}', space=vmem, size = 0x8000, scoped, tag = 'input window, operand 5, single buffered']
    #allocation8 [shape = 'u8[32768]{0}', space=vmem, size = 0x8000, scoped, tag = 'input window, operand 7, single buffered']
    #allocation9 [shape = 's32[1]{0}', space=sflag, size = 0x4, scoped, tag = 'scoped memory for tpu_custom_call.1']
    #allocation10 [shape = 'u8[8192]{0}', space=vmem, size = 0x2000, scoped, tag = 'output window, operand 0']
    %14 = vsyncpa [#allocation3], 0
    %15 = vsyncpa [#allocation6], 0
    %16 = vsyncpa [#allocation9], 0
    %17 = vsyncpa [#allocation4], 0
    %s18 = scalar_lea.sflag [#allocation4], 1
    %19 = vsyncpa %s18, 0
    loop: start=0, step=1, limit=4
    $region2: #{tpu_custom_call.1} parent=1 // loop_pre_header
      _
    $region3: #{tpu_custom_call.1} parent=1 // loop_header
      %s21 = sphi 0, %s25
      %p22 = scmp.ge.s32.totalorder %s21, 4
      %s31 = sphi 0, %s33
      %s34 = sphi 0, %s31
      %s35 = sphi 0, %s34
      %s51 = sphi 0, %s35
      %s57 = sphi 0, %s59
      %s60 = sphi 0, %s57
      %s61 = sphi 0, %s60
      %s77 = sphi 0, %s61
      %s81 = sphi 0, %s81
      %s83 = sphi 0, %s81
      %s84 = sphi 0, %s83
      %s98 = sphi 0, %s84
      %s102 = sphi 0, %s102
      %s104 = sphi 0, %s102
      %s105 = sphi 0, %s104
      %s119 = sphi 0, %s105
      %s123 = sphi 0, %s123
      %s125 = sphi 0, %s123
      %s126 = sphi 0, %s125
      %s140 = sphi 0, %s126
      %s144 = sphi 0, %s144
      %s146 = sphi 0, %s144
      %s147 = sphi 0, %s146
      %s161 = sphi 0, %s147
      %s165 = sphi 0, %s165
      %s167 = sphi 0, %s165
      %s168 = sphi 0, %s167
      %s182 = sphi 0, %s168
      %s186 = sphi 0, %s186
      %s188 = sphi 0, %s186
      %s189 = sphi 0, %s188
      %s203 = sphi 0, %s189
      %s207 = sphi 0, %s207
      %s209 = sphi 0, %s207
      %s210 = sphi 0, %s209
      %s224 = sphi 0, %s210
      %s230 = sphi 0, %s232
      %s233 = sphi 0, %s230
      %s234 = sphi 0, %s233
      %s250 = sphi 0, %s234
    $region4: #{tpu_custom_call.1} parent=1 // loop_header_branch
      %24 = sbr.rel (%p22) target = $region8
    $region5: #{tpu_custom_call.1} parent=1 // loop_body
      %s26 = ssub.s32 %s21, 1
      %s27 = ssub.s32 %s21, 2
      %s28 = sadd.s32 %s21, 1
      %s29 = ssub.s32 %s21, %s28
      %p30 = scmp.eq.s32.totalorder %s29, 0
      %s32 = sadd.s32 %s31, 1
      %s33 = scalar_select %p30, %s31, %s32
      %p36 = pneg %p30
      %p37 = scmp.eq.s32.totalorder %s21, 1
      %p38 = por %p36, %p37
      %p39 = scmp.ne.s32.totalorder %s31, %s34
      %p40 = scmp.eq.s32.totalorder %s21, 0
      %p41 = por %p39, %p40
      %p42 = scmp.ne.s32.totalorder %s31, %s34
      %p43 = scmp.eq.s32.totalorder %s26, 1
      %p44 = por %p42, %p43
      %p45 = scmp.ne.s32.totalorder %s34, %s35
      %p46 = scmp.eq.s32.totalorder %s26, 0
      %p47 = por %p45, %p46
      %p48 = scmp.ne.s32.totalorder %s34, %s35
      %p49 = scmp.eq.s32.totalorder %s27, 1
      %p50 = por %p48, %p49
      %p52 = scmp.ne.s32.totalorder %s35, %s51
      %p53 = scmp.eq.s32.totalorder %s27, 0
      %p54 = por %p52, %p53
      %s55 = ssub.s32 %s21, %s28
      %p56 = scmp.eq.s32.totalorder %s55, 0
      %s58 = sadd.s32 %s57, 1
      %s59 = scalar_select %p56, %s57, %s58
      %p62 = pneg %p56
      %p63 = scmp.eq.s32.totalorder %s21, 1
      %p64 = por %p62, %p63
      %p65 = scmp.ne.s32.totalorder %s57, %s60
      %p66 = scmp.eq.s32.totalorder %s21, 0
      %p67 = por %p65, %p66
      %p68 = scmp.ne.s32.totalorder %s57, %s60
      %p69 = scmp.eq.s32.totalorder %s26, 1
      %p70 = por %p68, %p69
      %p71 = scmp.ne.s32.totalorder %s60, %s61
      %p72 = scmp.eq.s32.totalorder %s26, 0
      %p73 = por %p71, %p72
      %p74 = scmp.ne.s32.totalorder %s60, %s61
      %p75 = scmp.eq.s32.totalorder %s27, 1
      %p76 = por %p74, %p75
      %p78 = scmp.ne.s32.totalorder %s61, %s77
      %p79 = scmp.eq.s32.totalorder %s27, 0
      %p80 = por %p78, %p79
      %s82 = sadd.s32 %s81, 1
      %p85 = scmp.eq.s32.totalorder %s21, 1
      %p86 = scmp.ne.s32.totalorder %s81, %s83
      %p87 = scmp.eq.s32.totalorder %s21, 0
      %p88 = por %p86, %p87
      %p89 = scmp.ne.s32.totalorder %s81, %s83
      %p90 = scmp.eq.s32.totalorder %s26, 1
      %p91 = por %p89, %p90
      %p92 = scmp.ne.s32.totalorder %s83, %s84
      %p93 = scmp.eq.s32.totalorder %s26, 0
      %p94 = por %p92, %p93
      %p95 = scmp.ne.s32.totalorder %s83, %s84
      %p96 = scmp.eq.s32.totalorder %s27, 1
      %p97 = por %p95, %p96
      %p99 = scmp.ne.s32.totalorder %s84, %s98
      %p100 = scmp.eq.s32.totalorder %s27, 0
      %p101 = por %p99, %p100
      %s103 = sadd.s32 %s102, 1
      %p106 = scmp.eq.s32.totalorder %s21, 1
      %p107 = scmp.ne.s32.totalorder %s102, %s104
      %p108 = scmp.eq.s32.totalorder %s21, 0
      %p109 = por %p107, %p108
      %p110 = scmp.ne.s32.totalorder %s102, %s104
      %p111 = scmp.eq.s32.totalorder %s26, 1
      %p112 = por %p110, %p111
      %p113 = scmp.ne.s32.totalorder %s104, %s105
      %p114 = scmp.eq.s32.totalorder %s26, 0
      %p115 = por %p113, %p114
      %p116 = scmp.ne.s32.totalorder %s104, %s105
      %p117 = scmp.eq.s32.totalorder %s27, 1
      %p118 = por %p116, %p117
      %p120 = scmp.ne.s32.totalorder %s105, %s119
      %p121 = scmp.eq.s32.totalorder %s27, 0
      %p122 = por %p120, %p121
      %s124 = sadd.s32 %s123, 1
      %p127 = scmp.eq.s32.totalorder %s21, 1
      %p128 = scmp.ne.s32.totalorder %s123, %s125
      %p129 = scmp.eq.s32.totalorder %s21, 0
      %p130 = por %p128, %p129
      %p131 = scmp.ne.s32.totalorder %s123, %s125
      %p132 = scmp.eq.s32.totalorder %s26, 1
      %p133 = por %p131, %p132
      %p134 = scmp.ne.s32.totalorder %s125, %s126
      %p135 = scmp.eq.s32.totalorder %s26, 0
      %p136 = por %p134, %p135
      %p137 = scmp.ne.s32.totalorder %s125, %s126
      %p138 = scmp.eq.s32.totalorder %s27, 1
      %p139 = por %p137, %p138
      %p141 = scmp.ne.s32.totalorder %s126, %s140
      %p142 = scmp.eq.s32.totalorder %s27, 0
      %p143 = por %p141, %p142
      %s145 = sadd.s32 %s144, 1
      %p148 = scmp.eq.s32.totalorder %s21, 1
      %p149 = scmp.ne.s32.totalorder %s144, %s146
      %p150 = scmp.eq.s32.totalorder %s21, 0
      %p151 = por %p149, %p150
      %p152 = scmp.ne.s32.totalorder %s144, %s146
      %p153 = scmp.eq.s32.totalorder %s26, 1
      %p154 = por %p152, %p153
      %p155 = scmp.ne.s32.totalorder %s146, %s147
      %p156 = scmp.eq.s32.totalorder %s26, 0
      %p157 = por %p155, %p156
      %p158 = scmp.ne.s32.totalorder %s146, %s147
      %p159 = scmp.eq.s32.totalorder %s27, 1
      %p160 = por %p158, %p159
      %p162 = scmp.ne.s32.totalorder %s147, %s161
      %p163 = scmp.eq.s32.totalorder %s27, 0
      %p164 = por %p162, %p163
      %s166 = sadd.s32 %s165, 1
      %p169 = scmp.eq.s32.totalorder %s21, 1
      %p170 = scmp.ne.s32.totalorder %s165, %s167
      %p171 = scmp.eq.s32.totalorder %s21, 0
      %p172 = por %p170, %p171
      %p173 = scmp.ne.s32.totalorder %s165, %s167
      %p174 = scmp.eq.s32.totalorder %s26, 1
      %p175 = por %p173, %p174
      %p176 = scmp.ne.s32.totalorder %s167, %s168
      %p177 = scmp.eq.s32.totalorder %s26, 0
      %p178 = por %p176, %p177
      %p179 = scmp.ne.s32.totalorder %s167, %s168
      %p180 = scmp.eq.s32.totalorder %s27, 1
      %p181 = por %p179, %p180
      %p183 = scmp.ne.s32.totalorder %s168, %s182
      %p184 = scmp.eq.s32.totalorder %s27, 0
      %p185 = por %p183, %p184
      %s187 = sadd.s32 %s186, 1
      %p190 = scmp.eq.s32.totalorder %s21, 1
      %p191 = scmp.ne.s32.totalorder %s186, %s188
      %p192 = scmp.eq.s32.totalorder %s21, 0
      %p193 = por %p191, %p192
      %p194 = scmp.ne.s32.totalorder %s186, %s188
      %p195 = scmp.eq.s32.totalorder %s26, 1
      %p196 = por %p194, %p195
      %p197 = scmp.ne.s32.totalorder %s188, %s189
      %p198 = scmp.eq.s32.totalorder %s26, 0
      %p199 = por %p197, %p198
      %p200 = scmp.ne.s32.totalorder %s188, %s189
      %p201 = scmp.eq.s32.totalorder %s27, 1
      %p202 = por %p200, %p201
      %p204 = scmp.ne.s32.totalorder %s189, %s203
      %p205 = scmp.eq.s32.totalorder %s27, 0
      %p206 = por %p204, %p205
      %s208 = sadd.s32 %s207, 1
      %p211 = scmp.eq.s32.totalorder %s21, 1
      %p212 = scmp.ne.s32.totalorder %s207, %s209
      %p213 = scmp.eq.s32.totalorder %s21, 0
      %p214 = por %p212, %p213
      %p215 = scmp.ne.s32.totalorder %s207, %s209
      %p216 = scmp.eq.s32.totalorder %s26, 1
      %p217 = por %p215, %p216
      %p218 = scmp.ne.s32.totalorder %s209, %s210
      %p219 = scmp.eq.s32.totalorder %s26, 0
      %p220 = por %p218, %p219
      %p221 = scmp.ne.s32.totalorder %s209, %s210
      %p222 = scmp.eq.s32.totalorder %s27, 1
      %p223 = por %p221, %p222
      %p225 = scmp.ne.s32.totalorder %s210, %s224
      %p226 = scmp.eq.s32.totalorder %s27, 0
      %p227 = por %p225, %p226
      %s228 = ssub.s32 %s21, %s28
      %p229 = scmp.eq.s32.totalorder %s228, 0
      %s231 = sadd.s32 %s230, 1
      %s232 = scalar_select %p229, %s230, %s231
      %p235 = pneg %p229
      %p236 = scmp.eq.s32.totalorder %s21, 1
      %p237 = por %p235, %p236
      %p238 = scmp.ne.s32.totalorder %s230, %s233
      %p239 = scmp.eq.s32.totalorder %s21, 0
      %p240 = por %p238, %p239
      %p241 = scmp.ne.s32.totalorder %s230, %s233
      %p242 = scmp.eq.s32.totalorder %s26, 1
      %p243 = por %p241, %p242
      %p244 = scmp.ne.s32.totalorder %s233, %s234
      %p245 = scmp.eq.s32.totalorder %s26, 0
      %p246 = por %p244, %p245
      %p247 = scmp.ne.s32.totalorder %s233, %s234
      %p248 = scmp.eq.s32.totalorder %s27, 1
      %p249 = por %p247, %p248
      %p251 = scmp.ne.s32.totalorder %s234, %s250
      %p252 = scmp.eq.s32.totalorder %s27, 0
      %p253 = por %p251, %p252
      %p254 = scmp.le.s32.totalorder 1, %s21
      %p255 = scmp.lt.s32.totalorder %s21, 3
      %p256 = pnand %p254, %p255
      %p257 = pneg %p256
      // Predicated region
      $region9: #{tpu_custom_call.1} parent=5 // pred_check
        _
      $region10: #{tpu_custom_call.1} parent=5 // pred_check_branch
        %259 = sbr.rel (%p256) target = $region12
      $region11: #{tpu_custom_call.1} parent=5 // pred_region
        %s260 = ssub.s32 %s21, 1
        // Predicated region
        $region13: #{tpu_custom_call.1} parent=11 // pred_check
          %p261 = pneg %p94
        $region14: #{tpu_custom_call.1} parent=11 // pred_check_branch
          %263 = sbr.rel (%p261) target = $region16
        $region15: #{tpu_custom_call.1} parent=11 // pred_region
          %s265 = ssub.s32 1024, 1024
          %266 = vsyncadd [#allocation3], %s265
          %s267 = sshll.u32 [#allocation2], 4
          %s268 = int_to_ptr.vmem [resolvable:$true] %s267
          %273 = dma.hbm_to_vmem [thread:$0]  %s2, 1024, %s268, [#allocation3], 64, 64, 4
        $region16: #{tpu_custom_call.1} parent=11 // pred_fallthru
          _
        // Predicated region
        $region17: #{tpu_custom_call.1} parent=11 // pred_check
          %p274 = pneg %p115
        $region18: #{tpu_custom_call.1} parent=11 // pred_check_branch
          %276 = sbr.rel (%p274) target = $region20
        $region19: #{tpu_custom_call.1} parent=11 // pred_region
          %s278 = ssub.s32 3072, 3072
          %279 = vsyncadd [#allocation6], %s278
          %s280 = sshll.u32 [#allocation5], 4
          %s281 = int_to_ptr.vmem [resolvable:$true] %s280
          %286 = dma.hbm_to_vmem [thread:$0]  %s3, 3072, %s281, [#allocation6], 192, 192, 12
        $region20: #{tpu_custom_call.1} parent=11 // pred_fallthru
          _
        // Predicated region
        $region21: #{tpu_custom_call.1} parent=11 // pred_check
          %p287 = pneg %p136
        $region22: #{tpu_custom_call.1} parent=11 // pred_check_branch
          %289 = sbr.rel (%p287) target = $region24
        $region23: #{tpu_custom_call.1} parent=11 // pred_region
          _
        $region24: #{tpu_custom_call.1} parent=11 // pred_fallthru
          _
        // Predicated region
        $region25: #{tpu_custom_call.1} parent=11 // pred_check
          %p290 = pneg %p157
        $region26: #{tpu_custom_call.1} parent=11 // pred_check_branch
          %292 = sbr.rel (%p290) target = $region28
        $region27: #{tpu_custom_call.1} parent=11 // pred_region
          %s294 = ssub.s32 1024, 1024
          %295 = vsyncadd [#allocation6], %s294
          %s296 = sshll.u32 [#allocation7], 4
          %s297 = int_to_ptr.vmem [resolvable:$true] %s296
          %302 = dma.hbm_to_vmem [thread:$0]  %s5, 1024, %s297, [#allocation6], 64, 64, 4
        $region28: #{tpu_custom_call.1} parent=11 // pred_fallthru
          _
        // Predicated region
        $region29: #{tpu_custom_call.1} parent=11 // pred_check
          %p303 = pneg %p178
        $region30: #{tpu_custom_call.1} parent=11 // pred_check_branch
          %305 = sbr.rel (%p303) target = $region32
        $region31: #{tpu_custom_call.1} parent=11 // pred_region
          _
        $region32: #{tpu_custom_call.1} parent=11 // pred_fallthru
          _
        // Predicated region
        $region33: #{tpu_custom_call.1} parent=11 // pred_check
          %p306 = pneg %p199
        $region34: #{tpu_custom_call.1} parent=11 // pred_check_branch
          %308 = sbr.rel (%p306) target = $region36
        $region35: #{tpu_custom_call.1} parent=11 // pred_region
          %s310 = ssub.s32 1024, 1024
          %311 = vsyncadd [#allocation9], %s310
          %s312 = sshll.u32 [#allocation8], 4
          %s313 = int_to_ptr.vmem [resolvable:$true] %s312
          %318 = dma.hbm_to_vmem [thread:$0]  %s7, 1024, %s313, [#allocation9], 64, 64, 4
        $region36: #{tpu_custom_call.1} parent=11 // pred_fallthru
          _
        // Predicated region
        $region37: #{tpu_custom_call.1} parent=11 // pred_check
          %p319 = pneg %p220
        $region38: #{tpu_custom_call.1} parent=11 // pred_check_branch
          %321 = sbr.rel (%p319) target = $region40
        $region39: #{tpu_custom_call.1} parent=11 // pred_region
          _
        $region40: #{tpu_custom_call.1} parent=11 // pred_fallthru
          _
      $region12: #{tpu_custom_call.1} parent=5 // pred_fallthru
        _
      %p322 = scmp.lt.s32.totalorder %s21, 2
      // Predicated region
      $region41: #{tpu_custom_call.1} parent=5 // pred_check
        %p323 = pneg %p322
      $region42: #{tpu_custom_call.1} parent=5 // pred_check_branch
        %325 = sbr.rel (%p323) target = $region44
      $region43: #{tpu_custom_call.1} parent=5 // pred_region
        // Predicated region
        $region45: #{tpu_custom_call.1} parent=43 // pred_check
          %p326 = pneg %p41
        $region46: #{tpu_custom_call.1} parent=43 // pred_check_branch
          %328 = sbr.rel (%p326) target = $region48
        $region47: #{tpu_custom_call.1} parent=43 // pred_region
          %s329 = smul.u32 2, %s21
          %p330 = scmp.lt.s32.totalorder %s329, 3
          %s331 = scalar_select %p330, %s329, 3
          %s332 = smul.addr %s331, 4
          %s333 = scalar_lea.vmem %s0, %s332
          %s334 = smul.u32 2, %s21
        $region48: #{tpu_custom_call.1} parent=43 // pred_fallthru
          _
        // Predicated region
        $region49: #{tpu_custom_call.1} parent=43 // pred_check
          %p335 = pneg %p67
        $region50: #{tpu_custom_call.1} parent=43 // pred_check_branch
          %337 = sbr.rel (%p335) target = $region52
        $region51: #{tpu_custom_call.1} parent=43 // pred_region
          %s338 = smul.u32 2, %s21
          %p339 = scmp.lt.s32.totalorder %s338, 3
          %s340 = scalar_select %p339, %s338, 3
          %s341 = smul.addr %s340, 8
          %s342 = scalar_lea.vmem %s1, %s341
          %s343 = smul.u32 2, %s21
        $region52: #{tpu_custom_call.1} parent=43 // pred_fallthru
          _
      $region44: #{tpu_custom_call.1} parent=5 // pred_fallthru
        _
      %p344 = scmp.le.s32.totalorder 1, %s21
      %p345 = scmp.lt.s32.totalorder %s21, 3
      %p346 = pnand %p344, %p345
      %p347 = pneg %p346
      // Predicated region
      $region53: #{tpu_custom_call.1} parent=5 // pred_check
        _
      $region54: #{tpu_custom_call.1} parent=5 // pred_check_branch
        %349 = sbr.rel (%p346) target = $region56
      $region55: #{tpu_custom_call.1} parent=5 // pred_region
        %s350 = ssub.s32 %s21, 1
        // Predicated region
        $region57: #{tpu_custom_call.1} parent=55 // pred_check
          %p351 = pneg %p94
        $region58: #{tpu_custom_call.1} parent=55 // pred_check_branch
          %353 = sbr.rel (%p351) target = $region60
        $region59: #{tpu_custom_call.1} parent=55 // pred_region
          %354 = dma.done [#allocation3], 1024
        $region60: #{tpu_custom_call.1} parent=55 // pred_fallthru
          _
        // Predicated region
        $region61: #{tpu_custom_call.1} parent=55 // pred_check
          %p355 = pneg %p115
        $region62: #{tpu_custom_call.1} parent=55 // pred_check_branch
          %357 = sbr.rel (%p355) target = $region64
        $region63: #{tpu_custom_call.1} parent=55 // pred_region
          %358 = dma.done [#allocation6], 3072
        $region64: #{tpu_custom_call.1} parent=55 // pred_fallthru
          _
        // Predicated region
        $region65: #{tpu_custom_call.1} parent=55 // pred_check
          %p359 = pneg %p157
        $region66: #{tpu_custom_call.1} parent=55 // pred_check_branch
          %361 = sbr.rel (%p359) target = $region68
        $region67: #{tpu_custom_call.1} parent=55 // pred_region
          %362 = dma.done [#allocation6], 1024
        $region68: #{tpu_custom_call.1} parent=55 // pred_fallthru
          _
        // Predicated region
        $region69: #{tpu_custom_call.1} parent=55 // pred_check
          %p363 = pneg %p199
        $region70: #{tpu_custom_call.1} parent=55 // pred_check_branch
          %365 = sbr.rel (%p363) target = $region72
        $region71: #{tpu_custom_call.1} parent=55 // pred_region
          %366 = dma.done [#allocation9], 1024
        $region72: #{tpu_custom_call.1} parent=55 // pred_fallthru
          _
        %s367 = smul.u32 2, %s26
        %p368 = scmp.lt.s32.totalorder %s367, 3
        %s369 = scalar_select %p368, %s367, 3
        %s370 = smul.addr %s369, 4
        %s371 = scalar_lea.vmem %s0, %s370
        %p372 = pneg %p47
        %p373 = pneg %p44
        %s374 = smul.u32 2, %s26
        %p375 = scmp.lt.s32.totalorder %s374, 3
        %s376 = scalar_select %p375, %s374, 3
        %s377 = smul.addr %s376, 8
        %s378 = scalar_lea.vmem %s1, %s377
        %p379 = pneg %p73
        %p380 = pneg %p70
        %p381 = pneg %p94
        %p382 = pneg %p91
        %p383 = pneg %p115
        %p384 = pneg %p112
        %p385 = pneg %p136
        %p386 = pneg %p133
        %p387 = pneg %p157
        %p388 = pneg %p154
        %p389 = pneg %p178
        %p390 = pneg %p175
        %p391 = pneg %p199
        %p392 = pneg %p196
        %p393 = pneg %p220
        %p394 = pneg %p217
        %p395 = pneg %p246
        %p396 = pneg %p243
        %s397 = sand.u32 %s233, 1
        %s398 = scalar_lea.sflag [#allocation4], %s397
        %s399 = sand.u32 %s233, 1
        %s400 = smul.addr %s399, 8
        %s401 = scalar_lea.vmem [#allocation10], %s400
        %s402 = smul.u32 2, %s26
        %p403 = scmp.lt.s32.totalorder %s402, 3
        %s404 = scalar_select %p403, %s402, 3
        %s405 = smul.addr %s404, 4
        %s406 = scalar_lea.vmem %s0, %s405
        %s407 = smul.u32 2, %s26
        %s408 = smul.u32 2, %s26
        %p409 = scmp.lt.s32.totalorder %s408, 3
        %s410 = scalar_select %p409, %s408, 3
        %s411 = smul.addr %s410, 8
        %s412 = scalar_lea.vmem %s1, %s411
        %s413 = smul.u32 2, %s26
        %s414 = smul.u32 2, %s26
        %v416 = vld [vmem:[%s406] sm:$0xf]
        %v417 = vld [vmem:[%s406 + $0x4] sm:$0xf]
        %v418 = vld [vmem:[%s412] sm:$0xff]
        %v419 = vld [vmem:[%s412 + $0x8] sm:$0xff]
        %v420 = vld [vmem:[#allocation2] sm:$0xf]
        %v421 = vld [vmem:[#allocation2 + $0x4] sm:$0xf]
        %v422 = vld [vmem:[#allocation2 + $0x8] sm:$0xf]
        %v423 = vld [vmem:[#allocation2 + $0xc] sm:$0xf]
        %v424 = vld [vmem:[#allocation2 + $0x10] sm:$0xf]
        %v425 = vld [vmem:[#allocation2 + $0x14] sm:$0xf]
        %v426 = vld [vmem:[#allocation2 + $0x18] sm:$0xf]
        %v427 = vld [vmem:[#allocation2 + $0x1c] sm:$0xf]
        %v428 = vld [vmem:[#allocation2 + $0x20] sm:$0xf]
        %v429 = vld [vmem:[#allocation2 + $0x24] sm:$0xf]
        %v430 = vld [vmem:[#allocation2 + $0x28] sm:$0xf]
        %v431 = vld [vmem:[#allocation2 + $0x2c] sm:$0xf]
        %v432 = vld [vmem:[#allocation2 + $0x30] sm:$0xf]
        %v433 = vld [vmem:[#allocation2 + $0x34] sm:$0xf]
        %v434 = vld [vmem:[#allocation2 + $0x38] sm:$0xf]
        %v435 = vld [vmem:[#allocation2 + $0x3c] sm:$0xf]
        %v436 = vld [vmem:[#allocation5] sm:$0xff]
        %v437 = vld [vmem:[#allocation5 + $0x8] sm:$0xf]
        %v438 = vld [vmem:[#allocation5 + $0xc] sm:$0xff]
        %v439 = vld [vmem:[#allocation5 + $0x14] sm:$0xf]
        %v440 = vld [vmem:[#allocation5 + $0x18] sm:$0xff]
        %v441 = vld [vmem:[#allocation5 + $0x20] sm:$0xf]
        %v442 = vld [vmem:[#allocation5 + $0x24] sm:$0xff]
        %v443 = vld [vmem:[#allocation5 + $0x2c] sm:$0xf]
        %v444 = vld [vmem:[#allocation5 + $0x30] sm:$0xff]
        %v445 = vld [vmem:[#allocation5 + $0x38] sm:$0xf]
        %v446 = vld [vmem:[#allocation5 + $0x3c] sm:$0xff]
        %v447 = vld [vmem:[#allocation5 + $0x44] sm:$0xf]
        %v448 = vld [vmem:[#allocation5 + $0x48] sm:$0xff]
        %v449 = vld [vmem:[#allocation5 + $0x50] sm:$0xf]
        %v450 = vld [vmem:[#allocation5 + $0x54] sm:$0xff]
        %v451 = vld [vmem:[#allocation5 + $0x5c] sm:$0xf]
        %v452 = vld [vmem:[#allocation5 + $0x60] sm:$0xff]
        %v453 = vld [vmem:[#allocation5 + $0x68] sm:$0xf]
        %v454 = vld [vmem:[#allocation5 + $0x6c] sm:$0xff]
        %v455 = vld [vmem:[#allocation5 + $0x74] sm:$0xf]
        %v456 = vld [vmem:[#allocation5 + $0x78] sm:$0xff]
        %v457 = vld [vmem:[#allocation5 + $0x80] sm:$0xf]
        %v458 = vld [vmem:[#allocation5 + $0x84] sm:$0xff]
        %v459 = vld [vmem:[#allocation5 + $0x8c] sm:$0xf]
        %v460 = vld [vmem:[#allocation5 + $0x90] sm:$0xff]
        %v461 = vld [vmem:[#allocation5 + $0x98] sm:$0xf]
        %v462 = vld [vmem:[#allocation5 + $0x9c] sm:$0xff]
        %v463 = vld [vmem:[#allocation5 + $0xa4] sm:$0xf]
        %v464 = vld [vmem:[#allocation5 + $0xa8] sm:$0xff]
        %v465 = vld [vmem:[#allocation5 + $0xb0] sm:$0xf]
        %v466 = vld [vmem:[#allocation5 + $0xb4] sm:$0xff]
        %v467 = vld [vmem:[#allocation5 + $0xbc] sm:$0xf]
        %v468 = vld [vmem:[%s4] sm:$0x7]
        %v470 = vlaneseq
        %v471 = vshrl.u32 %v470, 7
        %v472 = vsub.s32 0, %v471
        %v473 = vrot.slane %v468, %v472
        %v474 = vlaneseq
        %v475 = vshrl.u32 %v474, 7
        %v476 = vsub.s32 1, %v475
        %v477 = vrot.slane %v468, %v476
        %v478 = vlaneseq
        %v479 = vshrl.u32 %v478, 7
        %v480 = vsub.s32 2, %v479
        %v481 = vrot.slane %v468, %v480
        %v487 = vunpack.c.l.b16 %v416
        %v488 = vunpack.c.l.b16 %v417
        %v489 = vpack.c.b16 %v488, %v487
        %v523 = vunpack.c.l.b16 %v436
        %v524 = vunpack.c.h.b16 %v436
        %v525 = vunpack.c.l.b16 %v437
        %v526 = vunpack.c.l.b16 %v438
        %v527 = vunpack.c.h.b16 %v438
        %v528 = vunpack.c.l.b16 %v439
        %v529 = vunpack.c.l.b16 %v440
        %v530 = vunpack.c.h.b16 %v440
        %v531 = vunpack.c.l.b16 %v441
        %v532 = vunpack.c.l.b16 %v442
        %v533 = vunpack.c.h.b16 %v442
        %v534 = vunpack.c.l.b16 %v443
        %v535 = vunpack.c.l.b16 %v444
        %v536 = vunpack.c.h.b16 %v444
        %v537 = vunpack.c.l.b16 %v445
        %v538 = vunpack.c.l.b16 %v446
        %v539 = vunpack.c.h.b16 %v446
        %v540 = vunpack.c.l.b16 %v447
        %v541 = vunpack.c.l.b16 %v448
        %v542 = vunpack.c.h.b16 %v448
        %v543 = vunpack.c.l.b16 %v449
        %v544 = vunpack.c.l.b16 %v450
        %v545 = vunpack.c.h.b16 %v450
        %v546 = vunpack.c.l.b16 %v451
        %v547 = vunpack.c.l.b16 %v452
        %v548 = vunpack.c.h.b16 %v452
        %v549 = vunpack.c.l.b16 %v453
        %v550 = vunpack.c.l.b16 %v454
        %v551 = vunpack.c.h.b16 %v454
        %v552 = vunpack.c.l.b16 %v455
        %v553 = vunpack.c.l.b16 %v456
        %v554 = vunpack.c.h.b16 %v456
        %v555 = vunpack.c.l.b16 %v457
        %v556 = vunpack.c.l.b16 %v458
        %v557 = vunpack.c.h.b16 %v458
        %v558 = vunpack.c.l.b16 %v459
        %v559 = vunpack.c.l.b16 %v460
        %v560 = vunpack.c.h.b16 %v460
        %v561 = vunpack.c.l.b16 %v461
        %v562 = vunpack.c.l.b16 %v462
        %v563 = vunpack.c.h.b16 %v462
        %v564 = vunpack.c.l.b16 %v463
        %v565 = vunpack.c.l.b16 %v464
        %v566 = vunpack.c.h.b16 %v464
        %v567 = vunpack.c.l.b16 %v465
        %v568 = vunpack.c.l.b16 %v466
        %v569 = vunpack.c.h.b16 %v466
        %v570 = vunpack.c.l.b16 %v467
        %v571 = vpack.c.b16 %v526, %v523
        %v572 = vpack.c.b16 %v527, %v524
        %v573 = vpack.c.b16 %v528, %v525
        %v574 = vpack.c.b16 %v532, %v529
        %v575 = vpack.c.b16 %v533, %v530
        %v576 = vpack.c.b16 %v534, %v531
        %v577 = vpack.c.b16 %v538, %v535
        %v578 = vpack.c.b16 %v539, %v536
        %v579 = vpack.c.b16 %v540, %v537
        %v580 = vpack.c.b16 %v544, %v541
        %v581 = vpack.c.b16 %v545, %v542
        %v582 = vpack.c.b16 %v546, %v543
        %v583 = vpack.c.b16 %v550, %v547
        %v584 = vpack.c.b16 %v551, %v548
        %v585 = vpack.c.b16 %v552, %v549
        %v586 = vpack.c.b16 %v556, %v553
        %v587 = vpack.c.b16 %v557, %v554
        %v588 = vpack.c.b16 %v558, %v555
        %v589 = vpack.c.b16 %v562, %v559
        %v590 = vpack.c.b16 %v563, %v560
        %v591 = vpack.c.b16 %v564, %v561
        %v592 = vpack.c.b16 %v568, %v565
        %v593 = vpack.c.b16 %v569, %v566
        %v594 = vpack.c.b16 %v570, %v567
        %619 = vmatprep.subr.bf16.mxu0 %v572
        %620 = vmatpush1.bf16.msra.mxu0 %v571
        %621 = vmatprep.subr.bf16.mxu0 %v575
        %622 = vmatpush1.bf16.msra.mxu0 %v574
        %623 = vmatprep.subr.bf16.mxu0 %v578
        %624 = vmatpush1.bf16.msra.mxu0 %v577
        %625 = vmatprep.subr.bf16.mxu0 %v581
        %626 = vmatpush1.bf16.msra.mxu0 %v580
        %627 = vmatprep.subr.bf16.mxu0 %v584
        %628 = vmatpush1.bf16.msra.mxu0 %v583
        %629 = vmatprep.subr.bf16.mxu0 %v587
        %630 = vmatpush1.bf16.msra.mxu0 %v586
        %631 = vmatprep.subr.bf16.mxu0 %v590
        %632 = vmatpush1.bf16.msra.mxu0 %v589
        %633 = vmatprep.subr.bf16.mxu0 %v593
        %634 = vmatpush1.bf16.msra.mxu0 %v592
        %635 = vmatprep.subr.bf16.mxu0 0
        %636 = vmatpush1.bf16.msra.mxu0 0
        %637 = vmatprep.subr.bf16.mxu0 0
        %638 = vmatpush1.bf16.msra.mxu0 0
        %639 = vmatprep.subr.bf16.mxu0 0
        %640 = vmatpush1.bf16.msra.mxu0 0
        %641 = vmatprep.subr.bf16.mxu0 0
        %642 = vmatpush1.bf16.msra.mxu0 0
        %643 = vmatprep.subr.bf16.mxu0 0
        %644 = vmatpush1.bf16.msra.mxu0 0
        %645 = vmatprep.subr.bf16.mxu0 0
        %646 = vmatpush1.bf16.msra.mxu0 0
        %647 = vmatprep.subr.bf16.mxu0 0
        %648 = vmatpush1.bf16.msra.mxu0 0
        %649 = vmatprep.subr.bf16.mxu0 0
        %650 = vmatpush1.bf16.msra.mxu0 0
        %651 = vmatprep.mubr.bf16.mxu0 0
        %652 = vmatmul.mubr.bf16.gmra.mrb[0].mxu0 %v489
        %v653 = vpop.f32.mrb[0].mxu0
        %v654 = vadd.f32 %v473, %v653
        %v655 = vpop.f32.mrb[0].mxu0
        %v656 = vadd.f32 %v477, %v655
        %v657 = vpop.f32.mrb[0].mxu0
        %v658 = vadd.f32 %v473, %v657
        %v659 = vpop.f32.mrb[0].mxu0
        %v660 = vadd.f32 %v477, %v659
        %661 = vdwg.mxu0
        %662 = vmatprep.subr.bf16.mxu0 0
        %663 = vmatpush1.bf16.msra.mxu0 %v573
        %664 = vmatprep.subr.bf16.mxu0 0
        %665 = vmatpush1.bf16.msra.mxu0 %v576
        %666 = vmatprep.subr.bf16.mxu0 0
        %667 = vmatpush1.bf16.msra.mxu0 %v579
        %668 = vmatprep.subr.bf16.mxu0 0
        %669 = vmatpush1.bf16.msra.mxu0 %v582
        %670 = vmatprep.subr.bf16.mxu0 0
        %671 = vmatpush1.bf16.msra.mxu0 %v585
        %672 = vmatprep.subr.bf16.mxu0 0
        %673 = vmatpush1.bf16.msra.mxu0 %v588
        %674 = vmatprep.subr.bf16.mxu0 0
        %675 = vmatpush1.bf16.msra.mxu0 %v591
        %676 = vmatprep.subr.bf16.mxu0 0
        %677 = vmatpush1.bf16.msra.mxu0 %v594
        %678 = vmatprep.subr.bf16.mxu0 0
        %679 = vmatpush1.bf16.msra.mxu0 0
        %680 = vmatprep.subr.bf16.mxu0 0
        %681 = vmatpush1.bf16.msra.mxu0 0
        %682 = vmatprep.subr.bf16.mxu0 0
        %683 = vmatpush1.bf16.msra.mxu0 0
        %684 = vmatprep.subr.bf16.mxu0 0
        %685 = vmatpush1.bf16.msra.mxu0 0
        %686 = vmatprep.subr.bf16.mxu0 0
        %687 = vmatpush1.bf16.msra.mxu0 0
        %688 = vmatprep.subr.bf16.mxu0 0
        %689 = vmatpush1.bf16.msra.mxu0 0
        %690 = vmatprep.subr.bf16.mxu0 0
        %691 = vmatpush1.bf16.msra.mxu0 0
        %692 = vmatprep.subr.bf16.mxu0 0
        %693 = vmatpush1.bf16.msra.mxu0 0
        %694 = vmatprep.mubr.bf16.mxu0 0
        %695 = vmatmul.mubr.bf16.gmra.mrb[0].mxu0 %v489
        %v696 = vpop.f32.mrb[0].mxu0
        %v697 = vadd.f32 %v481, %v696
        %v698 = vpop.f32.mrb[0].mxu0
        %v699 = vpop.f32.mrb[0].mxu0
        %v700 = vadd.f32 %v481, %v699
        %v701 = vpop.f32.mrb[0].mxu0
        %702 = vdwg.mxu0
        %704 = vset.pattern.permute.xlu0 0
        %705 = vperm.xlu0 %704, %v418
        %v706 = vpop.permute.xlu0 %705
        %709 = vset.pattern.permute.xlu0 0
        %710 = vperm.xlu0 %709, %v419
        %v711 = vpop.permute.xlu0 %710
        %v713 = vadd.f32 %v697, %v706
        %v714 = vadd.f32 %v700, %v711
        %v715 = vrot.slane %v713, 4
        %v716 = vmax.f32 %v713, %v715
        %v717 = vrot.slane %v716, 2
        %v718 = vmax.f32 %v716, %v717
        %v719 = vrot.slane %v718, 1
        %v720 = vmax.f32 %v718, %v719
        %v721 = vrot.slane %v714, 4
        %v722 = vmax.f32 %v714, %v721
        %v723 = vrot.slane %v722, 2
        %v724 = vmax.f32 %v722, %v723
        %v725 = vrot.slane %v724, 1
        %v726 = vmax.f32 %v724, %v725
        %v727 = vsub.f32 %v713, %v720
        %v728 = vsub.f32 %v714, %v726
        %v729 = vmul.f32 %v727, 1.442695
        %v730 = vpow.pop %v729
        %v731 = vmul.f32 %v728, 1.442695
        %v732 = vpow.pop %v731
        %v733 = vrot.slane %v730, 4
        %v734 = vadd.f32 %v730, %v733
        %v735 = vrot.slane %v734, 2
        %v736 = vadd.f32 %v734, %v735
        %v737 = vrot.slane %v736, 1
        %v738 = vadd.f32 %v736, %v737
        %v739 = vrot.slane %v732, 4
        %v740 = vadd.f32 %v732, %v739
        %v741 = vrot.slane %v740, 2
        %v742 = vadd.f32 %v740, %v741
        %v743 = vrot.slane %v742, 1
        %v744 = vadd.f32 %v742, %v743
        %v745 = vrcp.pop %v738
        %v746 = vmul.f32 1.0, %v745
        %v747 = vrcp.pop %v744
        %v748 = vmul.f32 1.0, %v747
        %v749 = vmul.f32 %v730, %v746
        %v750 = vmul.f32 %v732, %v748
        %v751 = vpack.c.bf16 %v750, %v749
        %v768 = vunpack.c.l.b16 %v420
        %v769 = vunpack.c.l.b16 %v421
        %v770 = vunpack.c.l.b16 %v422
        %v771 = vunpack.c.l.b16 %v423
        %v772 = vunpack.c.l.b16 %v424
        %v773 = vunpack.c.l.b16 %v425
        %v774 = vunpack.c.l.b16 %v426
        %v775 = vunpack.c.l.b16 %v427
        %v776 = vunpack.c.l.b16 %v428
        %v777 = vunpack.c.l.b16 %v429
        %v778 = vunpack.c.l.b16 %v430
        %v779 = vunpack.c.l.b16 %v431
        %v780 = vunpack.c.l.b16 %v432
        %v781 = vunpack.c.l.b16 %v433
        %v782 = vunpack.c.l.b16 %v434
        %v783 = vunpack.c.l.b16 %v435
        %v784 = vpack.c.b16 %v769, %v768
        %v785 = vpack.c.b16 %v771, %v770
        %v786 = vpack.c.b16 %v773, %v772
        %v787 = vpack.c.b16 %v775, %v774
        %v788 = vpack.c.b16 %v777, %v776
        %v789 = vpack.c.b16 %v779, %v778
        %v790 = vpack.c.b16 %v781, %v780
        %v791 = vpack.c.b16 %v783, %v782
        %800 = vmatprep.subr.bf16.mxu0 0
        %801 = vmatpush1.bf16.msra.mxu0 %v784
        %802 = vmatprep.subr.bf16.mxu0 0
        %803 = vmatpush1.bf16.msra.mxu0 %v785
        %804 = vmatprep.subr.bf16.mxu0 0
        %805 = vmatpush1.bf16.msra.mxu0 %v786
        %806 = vmatprep.subr.bf16.mxu0 0
        %807 = vmatpush1.bf16.msra.mxu0 %v787
        %808 = vmatprep.subr.bf16.mxu0 0
        %809 = vmatpush1.bf16.msra.mxu0 %v788
        %810 = vmatprep.subr.bf16.mxu0 0
        %811 = vmatpush1.bf16.msra.mxu0 %v789
        %812 = vmatprep.subr.bf16.mxu0 0
        %813 = vmatpush1.bf16.msra.mxu0 %v790
        %814 = vmatprep.subr.bf16.mxu0 0
        %815 = vmatpush1.bf16.msra.mxu0 %v791
        %816 = vmatprep.subr.bf16.mxu0 0
        %817 = vmatpush1.bf16.msra.mxu0 0
        %818 = vmatprep.subr.bf16.mxu0 0
        %819 = vmatpush1.bf16.msra.mxu0 0
        %820 = vmatprep.subr.bf16.mxu0 0
        %821 = vmatpush1.bf16.msra.mxu0 0
        %822 = vmatprep.subr.bf16.mxu0 0
        %823 = vmatpush1.bf16.msra.mxu0 0
        %824 = vmatprep.subr.bf16.mxu0 0
        %825 = vmatpush1.bf16.msra.mxu0 0
        %826 = vmatprep.subr.bf16.mxu0 0
        %827 = vmatpush1.bf16.msra.mxu0 0
        %828 = vmatprep.subr.bf16.mxu0 0
        %829 = vmatpush1.bf16.msra.mxu0 0
        %830 = vmatprep.subr.bf16.mxu0 0
        %831 = vmatpush1.bf16.msra.mxu0 0
        %832 = vmatprep.mubr.bf16.mxu0 0
        %833 = vmatmul.mubr.bf16.gmra.mrb[0].mxu0 %v751
        %v834 = vpop.f32.mrb[0].mxu0
        %v835 = vadd.f32 0.0, %v834
        %v836 = vpop.f32.mrb[0].mxu0
        %v837 = vpop.f32.mrb[0].mxu0
        %v838 = vadd.f32 0.0, %v837
        %v839 = vpop.f32.mrb[0].mxu0
        %840 = vdwg.mxu0
        %v841 = vmul.f32 %v835, %v654
        %v842 = vmul.f32 %v838, %v658
        %v843 = vrot.slane %v841, 4
        %v844 = vadd.f32 %v841, %v843
        %v845 = vrot.slane %v844, 2
        %v846 = vadd.f32 %v844, %v845
        %v847 = vrot.slane %v846, 1
        %v848 = vadd.f32 %v846, %v847
        %v849 = vrot.slane %v842, 4
        %v850 = vadd.f32 %v842, %v849
        %v851 = vrot.slane %v850, 2
        %v852 = vadd.f32 %v850, %v851
        %v853 = vrot.slane %v852, 1
        %v854 = vadd.f32 %v852, %v853
        %v855 = vmul.f32 %v656, %v848
        %v856 = vmul.f32 %v660, %v854
        %v857 = vpack.c.bf16 %v856, %v855
        %v858 = vld [vmem:[#allocation7] sm:$0xf]
        %v859 = vld [vmem:[#allocation7 + $0x4] sm:$0xf]
        %v860 = vld [vmem:[#allocation7 + $0x8] sm:$0xf]
        %v861 = vld [vmem:[#allocation7 + $0xc] sm:$0xf]
        %v862 = vld [vmem:[#allocation7 + $0x10] sm:$0xf]
        %v863 = vld [vmem:[#allocation7 + $0x14] sm:$0xf]
        %v864 = vld [vmem:[#allocation7 + $0x18] sm:$0xf]
        %v865 = vld [vmem:[#allocation7 + $0x1c] sm:$0xf]
        %v866 = vld [vmem:[#allocation7 + $0x20] sm:$0xf]
        %v867 = vld [vmem:[#allocation7 + $0x24] sm:$0xf]
        %v868 = vld [vmem:[#allocation7 + $0x28] sm:$0xf]
        %v869 = vld [vmem:[#allocation7 + $0x2c] sm:$0xf]
        %v870 = vld [vmem:[#allocation7 + $0x30] sm:$0xf]
        %v871 = vld [vmem:[#allocation7 + $0x34] sm:$0xf]
        %v872 = vld [vmem:[#allocation7 + $0x38] sm:$0xf]
        %v873 = vld [vmem:[#allocation7 + $0x3c] sm:$0xf]
        %v874 = vld [vmem:[%s6] sm:$0x1]
        %v876 = vlaneseq
        %v877 = vshrl.u32 %v876, 7
        %v878 = vsub.s32 0, %v877
        %v879 = vrot.slane %v874, %v878
        %v897 = vunpack.c.l.b16 %v858
        %v898 = vunpack.c.l.b16 %v859
        %v899 = vunpack.c.l.b16 %v860
        %v900 = vunpack.c.l.b16 %v861
        %v901 = vunpack.c.l.b16 %v862
        %v902 = vunpack.c.l.b16 %v863
        %v903 = vunpack.c.l.b16 %v864
        %v904 = vunpack.c.l.b16 %v865
        %v905 = vunpack.c.l.b16 %v866
        %v906 = vunpack.c.l.b16 %v867
        %v907 = vunpack.c.l.b16 %v868
        %v908 = vunpack.c.l.b16 %v869
        %v909 = vunpack.c.l.b16 %v870
        %v910 = vunpack.c.l.b16 %v871
        %v911 = vunpack.c.l.b16 %v872
        %v912 = vunpack.c.l.b16 %v873
        %v913 = vpack.c.b16 %v898, %v897
        %v914 = vpack.c.b16 %v900, %v899
        %v915 = vpack.c.b16 %v902, %v901
        %v916 = vpack.c.b16 %v904, %v903
        %v917 = vpack.c.b16 %v906, %v905
        %v918 = vpack.c.b16 %v908, %v907
        %v919 = vpack.c.b16 %v910, %v909
        %v920 = vpack.c.b16 %v912, %v911
        %929 = vmatprep.subr.bf16.mxu0 0
        %930 = vmatpush1.bf16.msra.mxu0 %v913
        %931 = vmatprep.subr.bf16.mxu0 0
        %932 = vmatpush1.bf16.msra.mxu0 %v914
        %933 = vmatprep.subr.bf16.mxu0 0
        %934 = vmatpush1.bf16.msra.mxu0 %v915
        %935 = vmatprep.subr.bf16.mxu0 0
        %936 = vmatpush1.bf16.msra.mxu0 %v916
        %937 = vmatprep.subr.bf16.mxu0 0
        %938 = vmatpush1.bf16.msra.mxu0 %v917
        %939 = vmatprep.subr.bf16.mxu0 0
        %940 = vmatpush1.bf16.msra.mxu0 %v918
        %941 = vmatprep.subr.bf16.mxu0 0
        %942 = vmatpush1.bf16.msra.mxu0 %v919
        %943 = vmatprep.subr.bf16.mxu0 0
        %944 = vmatpush1.bf16.msra.mxu0 %v920
        %945 = vmatprep.subr.bf16.mxu0 0
        %946 = vmatpush1.bf16.msra.mxu0 0
        %947 = vmatprep.subr.bf16.mxu0 0
        %948 = vmatpush1.bf16.msra.mxu0 0
        %949 = vmatprep.subr.bf16.mxu0 0
        %950 = vmatpush1.bf16.msra.mxu0 0
        %951 = vmatprep.subr.bf16.mxu0 0
        %952 = vmatpush1.bf16.msra.mxu0 0
        %953 = vmatprep.subr.bf16.mxu0 0
        %954 = vmatpush1.bf16.msra.mxu0 0
        %955 = vmatprep.subr.bf16.mxu0 0
        %956 = vmatpush1.bf16.msra.mxu0 0
        %957 = vmatprep.subr.bf16.mxu0 0
        %958 = vmatpush1.bf16.msra.mxu0 0
        %959 = vmatprep.subr.bf16.mxu0 0
        %960 = vmatpush1.bf16.msra.mxu0 0
        %961 = vmatprep.mubr.bf16.mxu0 0
        %962 = vmatmul.mubr.bf16.gmra.mrb[0].mxu0 %v857
        %v963 = vpop.f32.mrb[0].mxu0
        %v964 = vadd.f32 %v879, %v963
        %v965 = vpop.f32.mrb[0].mxu0
        %v966 = vpop.f32.mrb[0].mxu0
        %v967 = vadd.f32 %v879, %v966
        %v968 = vpop.f32.mrb[0].mxu0
        %969 = vdwg.mxu0
        %v970 = vadd.f32 %v964, %v706
        %v971 = vadd.f32 %v967, %v711
        %v972 = vrot.slane %v970, 4
        %v973 = vmax.f32 %v970, %v972
        %v974 = vrot.slane %v973, 2
        %v975 = vmax.f32 %v973, %v974
        %v976 = vrot.slane %v975, 1
        %v977 = vmax.f32 %v975, %v976
        %v978 = vrot.slane %v971, 4
        %v979 = vmax.f32 %v971, %v978
        %v980 = vrot.slane %v979, 2
        %v981 = vmax.f32 %v979, %v980
        %v982 = vrot.slane %v981, 1
        %v983 = vmax.f32 %v981, %v982
        %v984 = vsub.f32 %v970, %v977
        %v985 = vsub.f32 %v971, %v983
        %v986 = vmul.f32 %v984, 1.442695
        %v987 = vpow.pop %v986
        %v988 = vmul.f32 %v985, 1.442695
        %v989 = vpow.pop %v988
        %v990 = vrot.slane %v987, 4
        %v991 = vadd.f32 %v987, %v990
        %v992 = vrot.slane %v991, 2
        %v993 = vadd.f32 %v991, %v992
        %v994 = vrot.slane %v993, 1
        %v995 = vadd.f32 %v993, %v994
        %v996 = vrot.slane %v989, 4
        %v997 = vadd.f32 %v989, %v996
        %v998 = vrot.slane %v997, 2
        %v999 = vadd.f32 %v997, %v998
        %v1000 = vrot.slane %v999, 1
        %v1001 = vadd.f32 %v999, %v1000
        %v1002 = vrcp.pop %v995
        %v1003 = vmul.f32 1.0, %v1002
        %v1004 = vrcp.pop %v1001
        %v1005 = vmul.f32 1.0, %v1004
        %v1006 = vmul.f32 %v987, %v1003
        %v1007 = vmul.f32 %v989, %v1005
        %v1008 = vpack.c.bf16 %v1007, %v1006
        %1009 = vmatprep.subr.bf16.mxu0 0
        %1010 = vmatpush1.bf16.msra.mxu0 %v784
        %1011 = vmatprep.subr.bf16.mxu0 0
        %1012 = vmatpush1.bf16.msra.mxu0 %v785
        %1013 = vmatprep.subr.bf16.mxu0 0
        %1014 = vmatpush1.bf16.msra.mxu0 %v786
        %1015 = vmatprep.subr.bf16.mxu0 0
        %1016 = vmatpush1.bf16.msra.mxu0 %v787
        %1017 = vmatprep.subr.bf16.mxu0 0
        %1018 = vmatpush1.bf16.msra.mxu0 %v788
        %1019 = vmatprep.subr.bf16.mxu0 0
        %1020 = vmatpush1.bf16.msra.mxu0 %v789
        %1021 = vmatprep.subr.bf16.mxu0 0
        %1022 = vmatpush1.bf16.msra.mxu0 %v790
        %1023 = vmatprep.subr.bf16.mxu0 0
        %1024 = vmatpush1.bf16.msra.mxu0 %v791
        %1025 = vmatprep.subr.bf16.mxu0 0
        %1026 = vmatpush1.bf16.msra.mxu0 0
        %1027 = vmatprep.subr.bf16.mxu0 0
        %1028 = vmatpush1.bf16.msra.mxu0 0
        %1029 = vmatprep.subr.bf16.mxu0 0
        %1030 = vmatpush1.bf16.msra.mxu0 0
        %1031 = vmatprep.subr.bf16.mxu0 0
        %1032 = vmatpush1.bf16.msra.mxu0 0
        %1033 = vmatprep.subr.bf16.mxu0 0
        %1034 = vmatpush1.bf16.msra.mxu0 0
        %1035 = vmatprep.subr.bf16.mxu0 0
        %1036 = vmatpush1.bf16.msra.mxu0 0
        %1037 = vmatprep.subr.bf16.mxu0 0
        %1038 = vmatpush1.bf16.msra.mxu0 0
        %1039 = vmatprep.subr.bf16.mxu0 0
        %1040 = vmatpush1.bf16.msra.mxu0 0
        %1041 = vmatprep.mubr.bf16.mxu0 0
        %1042 = vmatmul.mubr.bf16.gmra.mrb[0].mxu0 %v1008
        %v1043 = vpop.f32.mrb[0].mxu0
        %v1044 = vadd.f32 0.0, %v1043
        %v1045 = vpop.f32.mrb[0].mxu0
        %v1046 = vpop.f32.mrb[0].mxu0
        %v1047 = vadd.f32 0.0, %v1046
        %v1048 = vpop.f32.mrb[0].mxu0
        %1049 = vdwg.mxu0
        %v1050 = vmul.f32 %v1044, %v855
        %v1051 = vmul.f32 %v1047, %v856
        %v1052 = vrot.slane %v1050, 4
        %v1053 = vadd.f32 %v1050, %v1052
        %v1054 = vrot.slane %v1053, 2
        %v1055 = vadd.f32 %v1053, %v1054
        %v1056 = vrot.slane %v1055, 1
        %v1057 = vadd.f32 %v1055, %v1056
        %v1058 = vrot.slane %v1051, 4
        %v1059 = vadd.f32 %v1051, %v1058
        %v1060 = vrot.slane %v1059, 2
        %v1061 = vadd.f32 %v1059, %v1060
        %v1062 = vrot.slane %v1061, 1
        %v1063 = vadd.f32 %v1061, %v1062
        %v1064 = vmul.f32 %v654, %v1057
        %v1065 = vmul.f32 %v658, %v1063
        %v1066 = vpack.c.bf16 %v1065, %v1064
        %v1067 = vld [vmem:[#allocation8] sm:$0xf]
        %v1068 = vld [vmem:[#allocation8 + $0x4] sm:$0xf]
        %v1069 = vld [vmem:[#allocation8 + $0x8] sm:$0xf]
        %v1070 = vld [vmem:[#allocation8 + $0xc] sm:$0xf]
        %v1071 = vld [vmem:[#allocation8 + $0x10] sm:$0xf]
        %v1072 = vld [vmem:[#allocation8 + $0x14] sm:$0xf]
        %v1073 = vld [vmem:[#allocation8 + $0x18] sm:$0xf]
        %v1074 = vld [vmem:[#allocation8 + $0x1c] sm:$0xf]
        %v1075 = vld [vmem:[#allocation8 + $0x20] sm:$0xf]
        %v1076 = vld [vmem:[#allocation8 + $0x24] sm:$0xf]
        %v1077 = vld [vmem:[#allocation8 + $0x28] sm:$0xf]
        %v1078 = vld [vmem:[#allocation8 + $0x2c] sm:$0xf]
        %v1079 = vld [vmem:[#allocation8 + $0x30] sm:$0xf]
        %v1080 = vld [vmem:[#allocation8 + $0x34] sm:$0xf]
        %v1081 = vld [vmem:[#allocation8 + $0x38] sm:$0xf]
        %v1082 = vld [vmem:[#allocation8 + $0x3c] sm:$0xf]
        %v1083 = vld [vmem:[%s8] sm:$0x1]
        %v1085 = vlaneseq
        %v1086 = vshrl.u32 %v1085, 7
        %v1087 = vsub.s32 0, %v1086
        %v1088 = vrot.slane %v1083, %v1087
        %v1106 = vunpack.c.l.b16 %v1067
        %v1107 = vunpack.c.l.b16 %v1068
        %v1108 = vunpack.c.l.b16 %v1069
        %v1109 = vunpack.c.l.b16 %v1070
        %v1110 = vunpack.c.l.b16 %v1071
        %v1111 = vunpack.c.l.b16 %v1072
        %v1112 = vunpack.c.l.b16 %v1073
        %v1113 = vunpack.c.l.b16 %v1074
        %v1114 = vunpack.c.l.b16 %v1075
        %v1115 = vunpack.c.l.b16 %v1076
        %v1116 = vunpack.c.l.b16 %v1077
        %v1117 = vunpack.c.l.b16 %v1078
        %v1118 = vunpack.c.l.b16 %v1079
        %v1119 = vunpack.c.l.b16 %v1080
        %v1120 = vunpack.c.l.b16 %v1081
        %v1121 = vunpack.c.l.b16 %v1082
        %v1122 = vpack.c.b16 %v1107, %v1106
        %v1123 = vpack.c.b16 %v1109, %v1108
        %v1124 = vpack.c.b16 %v1111, %v1110
        %v1125 = vpack.c.b16 %v1113, %v1112
        %v1126 = vpack.c.b16 %v1115, %v1114
        %v1127 = vpack.c.b16 %v1117, %v1116
        %v1128 = vpack.c.b16 %v1119, %v1118
        %v1129 = vpack.c.b16 %v1121, %v1120
        %1138 = vmatprep.subr.bf16.mxu0 0
        %1139 = vmatpush1.bf16.msra.mxu0 %v1122
        %1140 = vmatprep.subr.bf16.mxu0 0
        %1141 = vmatpush1.bf16.msra.mxu0 %v1123
        %1142 = vmatprep.subr.bf16.mxu0 0
        %1143 = vmatpush1.bf16.msra.mxu0 %v1124
        %1144 = vmatprep.subr.bf16.mxu0 0
        %1145 = vmatpush1.bf16.msra.mxu0 %v1125
        %1146 = vmatprep.subr.bf16.mxu0 0
        %1147 = vmatpush1.bf16.msra.mxu0 %v1126
        %1148 = vmatprep.subr.bf16.mxu0 0
        %1149 = vmatpush1.bf16.msra.mxu0 %v1127
        %1150 = vmatprep.subr.bf16.mxu0 0
        %1151 = vmatpush1.bf16.msra.mxu0 %v1128
        %1152 = vmatprep.subr.bf16.mxu0 0
        %1153 = vmatpush1.bf16.msra.mxu0 %v1129
        %1154 = vmatprep.subr.bf16.mxu0 0
        %1155 = vmatpush1.bf16.msra.mxu0 0
        %1156 = vmatprep.subr.bf16.mxu0 0
        %1157 = vmatpush1.bf16.msra.mxu0 0
        %1158 = vmatprep.subr.bf16.mxu0 0
        %1159 = vmatpush1.bf16.msra.mxu0 0
        %1160 = vmatprep.subr.bf16.mxu0 0
        %1161 = vmatpush1.bf16.msra.mxu0 0
        %1162 = vmatprep.subr.bf16.mxu0 0
        %1163 = vmatpush1.bf16.msra.mxu0 0
        %1164 = vmatprep.subr.bf16.mxu0 0
        %1165 = vmatpush1.bf16.msra.mxu0 0
        %1166 = vmatprep.subr.bf16.mxu0 0
        %1167 = vmatpush1.bf16.msra.mxu0 0
        %1168 = vmatprep.subr.bf16.mxu0 0
        %1169 = vmatpush1.bf16.msra.mxu0 0
        %1170 = vmatprep.mubr.bf16.mxu0 0
        %1171 = vmatmul.mubr.bf16.gmra.mrb[0].mxu0 %v1066
        %v1172 = vpop.f32.mrb[0].mxu0
        %v1173 = vadd.f32 %v1088, %v1172
        %v1174 = vpop.f32.mrb[0].mxu0
        %v1175 = vpop.f32.mrb[0].mxu0
        %v1176 = vadd.f32 %v1088, %v1175
        %v1177 = vpop.f32.mrb[0].mxu0
        %1178 = vdwg.mxu0
        %v1179 = vadd.f32 %v1173, %v654
        %v1180 = vadd.f32 %v1176, %v658
        %v1181 = vpack.c.bf16 %v1179, %v1179
        %v1182 = vpack.c.bf16 %v1180, %v1180
        %1183 = vst [vmem:[%s401] sm:$0xf] %v1181
        %1184 = vst [vmem:[%s401 + $0x4] sm:$0xf] %v1182
        %s1185 = sand.u32 %s233, 1
        %s1186 = scalar_lea.sflag [#allocation4], %s1185
        %s1187 = sand.u32 %s233, 1
        %s1188 = smul.addr %s1187, 8
        %s1189 = scalar_lea.vmem [#allocation10], %s1188
        // Predicated region
        $region73: #{tpu_custom_call.1} parent=55 // pred_check
          %p1190 = pneg %p243
        $region74: #{tpu_custom_call.1} parent=55 // pred_check_branch
          %1192 = sbr.rel (%p1190) target = $region76
        $region75: #{tpu_custom_call.1} parent=55 // pred_region
          %s1193 = smul.u32 2, %s26
          %s1195 = ssub.s32 128, 128
          %1196 = vsyncadd %s1186, %s1195
          %s1197 = smul.addr %s1193, 64
          %s1198 = scalar_lea.hbm %s9, %s1197
          %s1199 = sshll.u32 %s1189, 4
          %s1200 = int_to_ptr.vmem [resolvable:$true] %s1199
          %1205 = dma.vmem_to_hbm [thread:$0]  %s1200, 128, %s1198, %s1186, 64, 64, 4
        $region76: #{tpu_custom_call.1} parent=55 // pred_fallthru
          _
      $region56: #{tpu_custom_call.1} parent=5 // pred_fallthru
        _
      %p1206 = scmp.le.s32.totalorder 2, %s21
      // Predicated region
      $region77: #{tpu_custom_call.1} parent=5 // pred_check
        %p1207 = pneg %p1206
      $region78: #{tpu_custom_call.1} parent=5 // pred_check_branch
        %1209 = sbr.rel (%p1207) target = $region80
      $region79: #{tpu_custom_call.1} parent=5 // pred_region
        %s1210 = ssub.s32 %s21, 2
        // Predicated region
        $region81: #{tpu_custom_call.1} parent=79 // pred_check
          %p1211 = pneg %p249
        $region82: #{tpu_custom_call.1} parent=79 // pred_check_branch
          %1213 = sbr.rel (%p1211) target = $region84
        $region83: #{tpu_custom_call.1} parent=79 // pred_region
          %s1214 = sand.u32 %s234, 1
          %s1215 = scalar_lea.sflag [#allocation4], %s1214
          %s1216 = sand.u32 %s234, 1
          %s1217 = smul.addr %s1216, 8
          %s1218 = scalar_lea.vmem [#allocation10], %s1217
          %1219 = dma.done %s1215, 128
        $region84: #{tpu_custom_call.1} parent=79 // pred_fallthru
          _
      $region80: #{tpu_custom_call.1} parent=5 // pred_fallthru
        _
    $region6: #{tpu_custom_call.1} parent=1 // loop_footer
      %s25 = sadd.s32 1, %s21
    $region7: #{tpu_custom_call.1} parent=1 // loop_footer_branch
      %20 = sbr.rel target = $region3
    $region8: #{tpu_custom_call.1} parent=1 // loop_exit
      _
    %1220 = vsyncpa [#allocation3], 1
    %s1221 = scalar_lea.sflag [#allocation3], 1
    %1222 = vsyncpa %s1221, 1
    %1223 = vsyncpa [#allocation6], 1
    %1224 = vsyncpa [#allocation9], 1
    %1225 = vsyncpa [#allocation4], 1
    %s1226 = scalar_lea.sflag [#allocation4], 1
    %1227 = vsyncpa %s1226, 1

</llo_original>
